<compile_context>
chip_gen: v7x
topology: tpu7x:2x2x1
jax: 0.10.0
libtpu: 0.0.40
codegen_flags: <defaults>
</compile_context>

<pallas_src>
import functools

import jax
import jax.numpy as jnp
import numpy as np
from jax.experimental import pallas as pl
from jax.experimental.pallas import tpu as pltpu


def _round_up(x, m):
    return ((x + m - 1) // m) * m


def _sigmoid(v):
    # sigmoid(v) == 0.5 * (1 + tanh(v / 2)): exactly one EUP op per element.
    return 0.5 * jnp.tanh(0.5 * v) + 0.5


def _ca_kernel(x_ref, s_ref, wx_ref, wl_ref, b_ref, out_ref, *,
               c, c_sub, mxu_dtype, negative_slope):
    """One (c, tile_hw) channels-first spatial tile of the fused CA forward.

      gates = Wx^T @ x + b_cat      Wx^T  = [ (Wg1 @ Wl)^T ; Wg2^T ; Wg3^T ]
      lin   = gates[0] + Wl^T @ s   b_cat = [ (bg1 @ Wl + bl)^T ; bg2^T ; bg3^T ]
      out   = leaky_relu(sigmoid(lin) * s + sigmoid(gates[1]) * tanh(gates[2]))
    """
    x = x_ref[...]                                  # (c, T) native dtype
    s = s_ref[...]                                  # (c, T)
    s_f32 = s.astype(jnp.float32)
    xm = x.astype(mxu_dtype)                        # MXU operand cast (VPU, free-ish)
    sm = s.astype(mxu_dtype)

    # One concatenated x-path matmul + one skip-path matmul, f32 accumulation.
    gates = jnp.dot(wx_ref[...], xm,
                    preferred_element_type=jnp.float32)      # (3*c_sub, T)
    gates = gates + b_ref[...]                               # bias, lane-broadcast
    lin_s = jnp.dot(wl_ref[...], sm,
                    preferred_element_type=jnp.float32)      # (c_sub, T)

    lin = gates[0:c, :] + lin_s[0:c, :]
    g2 = gates[c_sub:c_sub + c, :]
    g3 = gates[2 * c_sub:2 * c_sub + c, :]

    out = _sigmoid(lin) * s_f32 + _sigmoid(g2) * jnp.tanh(g3)
    out = jnp.where(out >= 0, out, negative_slope * out)     # LeakyReLU
    out_ref[...] = out.astype(out_ref.dtype)


def ca_forward(x_nchw, skip_nchw, params, *, mxu_dtype=jnp.bfloat16,
               negative_slope=0.01):
    """CA forward.  x, skip: (b, c, h, w) NCHW.  Returns (x, skip_out) NCHW.

    x passes through the module unchanged (the two rearranges cancel), so it is
    returned as-is; only the skip-gate path runs in the kernel.
    """
    b, c, h, w = x_nchw.shape
    assert skip_nchw.shape == x_nchw.shape
    hw = h * w
    out_dtype = skip_nchw.dtype
    mxu_dtype = jnp.dtype(mxu_dtype)
    in_it = x_nchw.dtype.itemsize
    out_it = np.dtype(out_dtype).itemsize
    mxu_it = mxu_dtype.itemsize

    c_sub = _round_up(c, 8)                         # f32 sublane granule

    # ---- weights: transpose to channels-first, fold Wl into the g1 path ----
    wg, bg = params["gate_w"], params["gate_b"]     # (c, 3c), (1, 3c)
    wl, bl = params["linear_w"], params["linear_b"]  # (c, c),  (1, c)
    wg1, wg2, wg3 = wg[:, :c], wg[:, c:2 * c], wg[:, 2 * c:]
    bg1, bg2, bg3 = bg[:, :c], bg[:, c:2 * c], bg[:, 2 * c:]

    w1_t = (wg1 @ wl).T                             # fold: lin never needs g1
    b1_t = (bg1 @ wl + bl).T                        # (c, 1)

    def pad_rows(m):                                # pad output channels to c_sub
        return jnp.pad(m, ((0, c_sub - m.shape[0]), (0, 0)))

    wx = jnp.concatenate(
        [pad_rows(w1_t), pad_rows(wg2.T), pad_rows(wg3.T)], axis=0
    ).astype(mxu_dtype)                             # (3*c_sub, c)
    wl_t = pad_rows(wl.T).astype(mxu_dtype)         # (c_sub, c)
    b_cat = jnp.concatenate(
        [pad_rows(b1_t), pad_rows(bg2.T), pad_rows(bg3.T)], axis=0
    ).astype(jnp.float32)                           # (3*c_sub, 1)

    # ---- activations: NCHW consumed directly as (b, c, h*w), no copies ----
    x3 = x_nchw.reshape(b, c, hw)
    s3 = skip_nchw.reshape(b, c, hw)

    # ---- spatial tile: generation-aware VMEM budget, keep grid >= 2 steps ----
    try:
        vmem_cap = int(getattr(pltpu.get_tpu_info(), "vmem_capacity_bytes"))
    except Exception:                               # non-TPU / older jax
        vmem_cap = 64 * 1024 * 1024
    vmem_limit = int(min(vmem_cap * 0.8, 112 * 1024 * 1024))

    weight_vmem = (wx.size + wl_t.size) * mxu_it + b_cat.size * 4
    per_col = (2 * c * (2 * in_it + out_it)         # double-buffered x/skip/out tiles
               + 4 * (3 * c_sub + 6 * c)            # f32 intermediates (gates etc.)
               + 2 * c * mxu_it)                    # in-kernel MXU casts
    budget = max(vmem_limit // 2 - 2 * weight_vmem, 2 * 1024 * 1024)
    max_cols = max(128, budget // per_col)

    tile = hw
    if b == 1 and hw >= 256:                        # keep >= 2 grid steps (v7x: 2 TCs)
        tile = max(128, ((hw // 2) // 128) * 128)
    tile = min(tile, max_cols)
    if tile < hw:
        tile = max(128, (tile // 128) * 128)        # blocked tiles must be lane-dense
    n_tiles = pl.cdiv(hw, tile)
    grid = (b, n_tiles)

    act_spec = pl.BlockSpec((None, c, tile), lambda bi, ti: (bi, 0, ti))
    out_spec = pl.BlockSpec((None, c, tile), lambda bi, ti: (bi, 0, ti))
    # Constant index_map: weights are DMA'd once and stay VMEM-resident.
    wx_spec = pl.BlockSpec((3 * c_sub, c), lambda bi, ti: (0, 0))
    wl_spec = pl.BlockSpec((c_sub, c), lambda bi, ti: (0, 0))
    b_spec = pl.BlockSpec((3 * c_sub, 1), lambda bi, ti: (0, 0))

    flops = 2 * b * hw * 4 * c_sub * c
    transcendentals = 3 * b * hw * c                # 2 sigmoids + 1 tanh, 1 EUP op each
    bytes_accessed = b * hw * c * (2 * in_it + out_it) + weight_vmem

    kernel = functools.partial(_ca_kernel, c=c, c_sub=c_sub,
                               mxu_dtype=mxu_dtype,
                               negative_slope=negative_slope)

    skip_out = pl.pallas_call(
        kernel,
        out_shape=jax.ShapeDtypeStruct((b, c, hw), out_dtype),
        grid_spec=pltpu.PrefetchScalarGridSpec(
            num_scalar_prefetch=0,
            grid=grid,
            in_specs=[act_spec, act_spec, wx_spec, wl_spec, b_spec],
            out_specs=out_spec,
        ),
        compiler_params=pltpu.CompilerParams(
            dimension_semantics=("parallel", "parallel"),
            vmem_limit_bytes=vmem_limit),
        cost_estimate=pl.CostEstimate(flops=int(flops),
                                      transcendentals=int(transcendentals),
                                      bytes_accessed=int(bytes_accessed)),
    )(x3, s3, wx, wl_t, b_cat)

    skip_out = skip_out.reshape(b, c, h, w)
    # x: rearrange b c h w -> b h w c -> b c h w is the identity.
    return x_nchw, skip_out


def init_params(key, dim):
    k1, k2, k3, k4 = jax.random.split(key, 4)
    # PyTorch nn.Linear weight is (out, in); store transposed (in, out).
    gate_w = jax.random.normal(k1, (dim, 3 * dim), jnp.float32) * 0.1
    gate_b = jax.random.normal(k2, (1, 3 * dim), jnp.float32) * 0.1
    linear_w = jax.random.normal(k3, (dim, dim), jnp.float32) * 0.1
    linear_b = jax.random.normal(k4, (1, dim), jnp.float32) * 0.1
    return {"gate_w": gate_w, "gate_b": gate_b,
            "linear_w": linear_w, "linear_b": linear_b}


def ca_reference(x_nchw, skip_nchw, params, negative_slope=0.01):
    """Pure-JAX reference mirroring the PyTorch forward exactly."""
    b, c, h, w = x_nchw.shape
    x = jnp.transpose(x_nchw, (0, 2, 3, 1))        # b h w c
    skip = jnp.transpose(skip_nchw, (0, 2, 3, 1))
    gate = x @ params["gate_w"] + params["gate_b"][0]
    gate = gate.reshape(b, h, w, 3, c)
    g1, g2, g3 = gate[..., 0, :], gate[..., 1, :], gate[..., 2, :]
    lin = (g1 + skip) @ params["linear_w"] + params["linear_b"][0]
    skip = jax.nn.sigmoid(lin) * skip + jax.nn.sigmoid(g2) * jnp.tanh(g3)
    skip = jnp.where(skip >= 0, skip, negative_slope * skip)
    x = jnp.transpose(x, (0, 3, 1, 2))
    skip = jnp.transpose(skip, (0, 3, 1, 2))
    return x, skip


if __name__ == "__main__":
    key = jax.random.PRNGKey(0)
    kp, kx, ks = jax.random.split(key, 3)

    # Test 1: b=2, dim=8, 16x16 spatial -> hw=256 full-slab tiles, grid=(2, 1).
    b, dim, h, w = 2, 8, 16, 16
    params = init_params(kp, dim)
    x = jax.random.normal(kx, (b, dim, h, w), jnp.float32)
    skip = jax.random.normal(ks, (b, dim, h, w), jnp.float32)
    x_ref, skip_ref = ca_reference(x, skip, params)

    # f32 MXU path: tight correctness gate.
    x_out, skip_out = ca_forward(x, skip, params, mxu_dtype=jnp.float32)
    jax.block_until_ready(skip_out)
    np.testing.assert_allclose(np.asarray(x_out), np.asarray(x_ref),
                               rtol=1e-5, atol=2e-5)
    np.testing.assert_allclose(np.asarray(skip_out), np.asarray(skip_ref),
                               rtol=1e-4, atol=1e-4)

    # Default bf16-MXU path (f32 accumulation + f32 gate math): loose check.
    _, skip_bf16 = ca_forward(x, skip, params)
    jax.block_until_ready(skip_bf16)
    np.testing.assert_allclose(np.asarray(skip_bf16), np.asarray(skip_ref),
                               rtol=5e-2, atol=5e-2)

    # Test 2: b=1, 32x32 spatial -> hw=1024, blocked path (tile=512, grid=(1, 2)).
    b2, h2, w2 = 1, 32, 32
    x2 = jax.random.normal(jax.random.PRNGKey(1), (b2, dim, h2, w2), jnp.float32)
    s2 = jax.random.normal(jax.random.PRNGKey(2), (b2, dim, h2, w2), jnp.float32)
    _, skip_ref2 = ca_reference(x2, s2, params)
    _, skip_out2 = ca_forward(x2, s2, params, mxu_dtype=jnp.float32)
    jax.block_until_ready(skip_out2)
    np.testing.assert_allclose(np.asarray(skip_out2), np.asarray(skip_ref2),
                               rtol=1e-4, atol=1e-4)

    print("KERNEL_OK")
</pallas_src>

<mosaic_0001>
module attributes {stable_mosaic.version = 11 : i64} {
  func.func @_ca_kernel(%arg0: i32, %arg1: i32, %arg2: memref<1x8x256xf32, #tpu.memory_space<vmem>>, %arg3: memref<1x8x256xf32, #tpu.memory_space<vmem>>, %arg4: memref<24x8xf32, #tpu.memory_space<vmem>>, %arg5: memref<8x8xf32, #tpu.memory_space<vmem>>, %arg6: memref<24x1xf32, #tpu.memory_space<vmem>>, %arg7: memref<1x8x256xf32, #tpu.memory_space<vmem>>) attributes {dimension_semantics = [#tpu.dimension_semantics<parallel>, #tpu.dimension_semantics<parallel>], iteration_bounds = array<i64: 2, 1>, scalar_prefetch = 0 : i64, scratch_operands = 0 : i64, tpu.core_type = #tpu.core_type<tc>, window_params = [{transform_indices = @transform_0, window_bounds = array<i64: 1, 8, 256>}, {transform_indices = @transform_1, window_bounds = array<i64: 1, 8, 256>}, {pipeline_mode = #tpu.pipeline_mode<synchronous>, transform_indices = @transform_2, window_bounds = array<i64: 24, 8>}, {pipeline_mode = #tpu.pipeline_mode<synchronous>, transform_indices = @transform_3, window_bounds = array<i64: 8, 8>}, {pipeline_mode = #tpu.pipeline_mode<synchronous>, transform_indices = @transform_4, window_bounds = array<i64: 24, 1>}, {transform_indices = @transform_5, window_bounds = array<i64: 1, 8, 256>}]} {
    %c0 = arith.constant 0 : index
    %c0_0 = arith.constant 0 : index
    %c0_1 = arith.constant 0 : index
    %0 = vector.load %arg2[%c0, %c0_0, %c0_1] : memref<1x8x256xf32, #tpu.memory_space<vmem>>, vector<1x8x256xf32>
    %1 = vector.shape_cast %0 : vector<1x8x256xf32> to vector<8x256xf32>
    %c0_2 = arith.constant 0 : index
    %c0_3 = arith.constant 0 : index
    %c0_4 = arith.constant 0 : index
    %2 = vector.load %arg3[%c0_2, %c0_3, %c0_4] : memref<1x8x256xf32, #tpu.memory_space<vmem>>, vector<1x8x256xf32>
    %3 = vector.shape_cast %2 : vector<1x8x256xf32> to vector<8x256xf32>
    %c0_5 = arith.constant 0 : index
    %c0_6 = arith.constant 0 : index
    %4 = vector.load %arg4[%c0_5, %c0_6] : memref<24x8xf32, #tpu.memory_space<vmem>>, vector<24x8xf32>
    %cst = arith.constant dense<0.000000e+00> : vector<24x256xf32>
    %5 = tpu.matmul %4, %1, %cst {dimension_numbers = #tpu.dot_dimension_numbers<[1], [0], [0], [1], [0, 0, 1, 1], [], []>} : vector<24x8xf32>, vector<8x256xf32>, vector<24x256xf32> -> vector<24x256xf32>
    %c0_7 = arith.constant 0 : index
    %c0_8 = arith.constant 0 : index
    %6 = vector.load %arg6[%c0_7, %c0_8] : memref<24x1xf32, #tpu.memory_space<vmem>>, vector<24x1xf32>
    %7 = vector.broadcast %6 : vector<24x1xf32> to vector<24x256xf32>
    %8 = arith.addf %5, %7 : vector<24x256xf32>
    %c0_9 = arith.constant 0 : index
    %c0_10 = arith.constant 0 : index
    %9 = vector.load %arg5[%c0_9, %c0_10] : memref<8x8xf32, #tpu.memory_space<vmem>>, vector<8x8xf32>
    %cst_11 = arith.constant dense<0.000000e+00> : vector<8x256xf32>
    %10 = tpu.matmul %9, %3, %cst_11 {dimension_numbers = #tpu.dot_dimension_numbers<[1], [0], [0], [1], [0, 0, 1, 1], [], []>} : vector<8x8xf32>, vector<8x256xf32>, vector<8x256xf32> -> vector<8x256xf32>
    %11 = vector.extract_strided_slice %8 {offsets = [0, 0], sizes = [8, 256], strides = [1, 1]} : vector<24x256xf32> to vector<8x256xf32>
    %12 = arith.addf %11, %10 : vector<8x256xf32>
    %13 = vector.extract_strided_slice %8 {offsets = [8, 0], sizes = [8, 256], strides = [1, 1]} : vector<24x256xf32> to vector<8x256xf32>
    %14 = vector.extract_strided_slice %8 {offsets = [16, 0], sizes = [8, 256], strides = [1, 1]} : vector<24x256xf32> to vector<8x256xf32>
    %cst_12 = arith.constant 5.000000e-01 : f32
    %15 = vector.broadcast %cst_12 : f32 to vector<8x256xf32>
    %16 = arith.mulf %15, %12 : vector<8x256xf32>
    %17 = math.tanh %16 : vector<8x256xf32>
    %cst_13 = arith.constant 5.000000e-01 : f32
    %18 = vector.broadcast %cst_13 : f32 to vector<8x256xf32>
    %19 = arith.mulf %18, %17 : vector<8x256xf32>
    %cst_14 = arith.constant 5.000000e-01 : f32
    %20 = vector.broadcast %cst_14 : f32 to vector<8x256xf32>
    %21 = arith.addf %19, %20 : vector<8x256xf32>
    %22 = arith.mulf %21, %3 : vector<8x256xf32>
    %cst_15 = arith.constant 5.000000e-01 : f32
    %23 = vector.broadcast %cst_15 : f32 to vector<8x256xf32>
    %24 = arith.mulf %23, %13 : vector<8x256xf32>
    %25 = math.tanh %24 : vector<8x256xf32>
    %cst_16 = arith.constant 5.000000e-01 : f32
    %26 = vector.broadcast %cst_16 : f32 to vector<8x256xf32>
    %27 = arith.mulf %26, %25 : vector<8x256xf32>
    %cst_17 = arith.constant 5.000000e-01 : f32
    %28 = vector.broadcast %cst_17 : f32 to vector<8x256xf32>
    %29 = arith.addf %27, %28 : vector<8x256xf32>
    %30 = math.tanh %14 : vector<8x256xf32>
    %31 = arith.mulf %29, %30 : vector<8x256xf32>
    %32 = arith.addf %22, %31 : vector<8x256xf32>
    %cst_18 = arith.constant 0.000000e+00 : f32
    %33 = vector.broadcast %cst_18 : f32 to vector<8x256xf32>
    %34 = arith.cmpf oge, %32, %33 : vector<8x256xf32>
    %cst_19 = arith.constant 0.00999999977 : f32
    %35 = vector.broadcast %cst_19 : f32 to vector<8x256xf32>
    %36 = arith.mulf %35, %32 : vector<8x256xf32>
    %37 = arith.select %34, %32, %36 : vector<8x256xi1>, vector<8x256xf32>
    %c0_20 = arith.constant 0 : index
    %c0_21 = arith.constant 0 : index
    %c0_22 = arith.constant 0 : index
    %38 = vector.load %arg7[%c0_20, %c0_21, %c0_22] : memref<1x8x256xf32, #tpu.memory_space<vmem>>, vector<1x8x256xf32>
    %39 = vector.shape_cast %38 : vector<1x8x256xf32> to vector<8x256xf32>
    %40 = vector.shape_cast %37 : vector<8x256xf32> to vector<1x8x256xf32>
    tpu.vector_store %arg7[%c0_20, %c0_21, %c0_22], %40 {strides = array<i32>} : memref<1x8x256xf32, #tpu.memory_space<vmem>>, vector<1x8x256xf32>,
    return
  }
  func.func @transform_0(%arg0: i32, %arg1: i32) -> (i32, i32, i32) {
    %c0_i32 = arith.constant 0 : i32
    %c0_i32_0 = arith.constant 0 : i32
    return %arg0, %c0_i32, %arg1 : i32, i32, i32
  }
  func.func @transform_1(%arg0: i32, %arg1: i32) -> (i32, i32, i32) {
    %c0_i32 = arith.constant 0 : i32
    %c0_i32_0 = arith.constant 0 : i32
    return %arg0, %c0_i32, %arg1 : i32, i32, i32
  }
  func.func @transform_2(%arg0: i32, %arg1: i32) -> (i32, i32) {
    %c0_i32 = arith.constant 0 : i32
    %c0_i32_0 = arith.constant 0 : i32
    %c0_i32_1 = arith.constant 0 : i32
    return %c0_i32, %c0_i32_0 : i32, i32
  }
  func.func @transform_3(%arg0: i32, %arg1: i32) -> (i32, i32) {
    %c0_i32 = arith.constant 0 : i32
    %c0_i32_0 = arith.constant 0 : i32
    %c0_i32_1 = arith.constant 0 : i32
    return %c0_i32, %c0_i32_0 : i32, i32
  }
  func.func @transform_4(%arg0: i32, %arg1: i32) -> (i32, i32) {
    %c0_i32 = arith.constant 0 : i32
    %c0_i32_0 = arith.constant 0 : i32
    %c0_i32_1 = arith.constant 0 : i32
    return %c0_i32, %c0_i32_0 : i32, i32
  }
  func.func @transform_5(%arg0: i32, %arg1: i32) -> (i32, i32, i32) {
    %c0_i32 = arith.constant 0 : i32
    %c0_i32_0 = arith.constant 0 : i32
    return %arg0, %c0_i32, %arg1 : i32, i32, i32
  }
}

</mosaic_0001>

<llo_original>
// kernel: tpu_custom_call.1
$region0: #{tpu_custom_call.1}
  #allocation0 [shape = 'u32[]', space=smem, size = 0x4, offset = 0x4, fixed_abs, tag = 'smem constant byte address 0x4 - core index']
  #allocation1 [shape = 'u32[144,128]{1,0:T(1,128)}', space=vmem, size = 0x12000, scoped, tag = 'internal scratch']
  %s0 = inlined_call_operand.vmem [shape: f32[2,8,256], index: 0, kind: input, shape index: {}]
  %s1 = inlined_call_operand.hbm [shape: f32[2,8,256], index: 1, kind: input, shape index: {}]
  %s2 = inlined_call_operand.vmem [shape: f32[24,8], index: 2, kind: input, shape index: {}]
  %s3 = inlined_call_operand.vmem [shape: f32[8,8], index: 3, kind: input, shape index: {}]
  %s4 = inlined_call_operand.vmem [shape: f32[24,1], index: 4, kind: input, shape index: {}]
  %s5 = inlined_call_operand.hbm [shape: f32[2,8,256], index: 5, kind: output, shape index: {}]
  %s6 = sld [smem:[#allocation0]]
  $region57: #{tpu_custom_call.1} parent=0
    _
  %s8 = ssub.s32 1, %s6
  %s9 = scalar_select 0, %s8, %s6
  $region1: #{tpu_custom_call.1} parent=0
    #allocation2 [shape = 'u8[16384]{0}', space=vmem, size = 0x4000, scoped, tag = 'input window, operand 1']
    #allocation3 [shape = 's32[2]{0}', space=sflag, size = 0x8, scoped, tag = 'scoped memory for tpu_custom_call.1']
    #allocation4 [shape = 's32[2]{0}', space=sflag, size = 0x8, scoped, tag = 'scoped memory for tpu_custom_call.1']
    #allocation5 [shape = 'u8[16384]{0}', space=vmem, size = 0x4000, scoped, tag = 'output window, operand 0']
    %10 = vsyncpa [#allocation3], 0
    %s11 = scalar_lea.sflag [#allocation3], 1
    %12 = vsyncpa %s11, 0
    %13 = vsyncpa [#allocation4], 0
    %s14 = scalar_lea.sflag [#allocation4], 1
    %15 = vsyncpa %s14, 0
    loop: start=0, step=1, limit=4
    $region2: #{tpu_custom_call.1} parent=1 // loop_pre_header
      _
    $region3: #{tpu_custom_call.1} parent=1 // loop_header
      %s17 = sphi 0, %s21
      %p18 = scmp.ge.s32.totalorder %s17, 4
      %s24 = sphi 0, %s36
      %s25 = sphi 0, %s32
      %s26 = sphi 0, %s24
      %s27 = sphi 0, %s25
      %s28 = sphi 0, %s26
      %s29 = sphi 0, %s27
      %s41 = sphi 0, %s43
      %s44 = sphi 0, %s41
      %s45 = sphi 0, %s44
      %s61 = sphi 0, %s45
      %s69 = sphi 0, %s71
      %s72 = sphi 0, %s69
      %s73 = sphi 0, %s72
      %s89 = sphi 0, %s73
      %s93 = sphi 0, %s93
      %s95 = sphi 0, %s93
      %s96 = sphi 0, %s95
      %s110 = sphi 0, %s96
      %s114 = sphi 0, %s114
      %s116 = sphi 0, %s114
      %s117 = sphi 0, %s116
      %s131 = sphi 0, %s117
      %s135 = sphi 0, %s135
      %s137 = sphi 0, %s135
      %s138 = sphi 0, %s137
      %s152 = sphi 0, %s138
      %s160 = sphi 0, %s162
      %s163 = sphi 0, %s160
      %s164 = sphi 0, %s163
      %s180 = sphi 0, %s164
    $region4: #{tpu_custom_call.1} parent=1 // loop_header_branch
      %20 = sbr.rel (%p18) target = $region8
    $region5: #{tpu_custom_call.1} parent=1 // loop_body
      %s22 = ssub.s32 %s17, 1
      %s23 = ssub.s32 %s17, 2
      %s30 = sadd.s32 1, %s25
      %p31 = scmp.ge.s32.totalorder %s30, 1
      %s32 = scalar_select %p31, 0, %s30
      %s33 = sadd.s32 1, %s24
      %s34 = scalar_select %p31, %s33, %s24
      %p35 = scmp.ge.s32.totalorder %s34, 2
      %s36 = scalar_select %p35, 0, %s34
      %s37 = ssub.s32 %s24, %s36
      %s38 = ssub.s32 %s25, %s32
      %s39 = sor.u32 %s37, %s38
      %p40 = scmp.eq.s32.totalorder %s39, 0
      %s42 = sadd.s32 %s41, 1
      %s43 = scalar_select %p40, %s41, %s42
      %p46 = pneg %p40
      %p47 = scmp.eq.s32.totalorder %s17, 1
      %p48 = por %p46, %p47
      %p49 = scmp.ne.s32.totalorder %s41, %s44
      %p50 = scmp.eq.s32.totalorder %s17, 0
      %p51 = por %p49, %p50
      %p52 = scmp.ne.s32.totalorder %s41, %s44
      %p53 = scmp.eq.s32.totalorder %s22, 1
      %p54 = por %p52, %p53
      %p55 = scmp.ne.s32.totalorder %s44, %s45
      %p56 = scmp.eq.s32.totalorder %s22, 0
      %p57 = por %p55, %p56
      %p58 = scmp.ne.s32.totalorder %s44, %s45
      %p59 = scmp.eq.s32.totalorder %s23, 1
      %p60 = por %p58, %p59
      %p62 = scmp.ne.s32.totalorder %s45, %s61
      %p63 = scmp.eq.s32.totalorder %s23, 0
      %p64 = por %p62, %p63
      %s65 = ssub.s32 %s24, %s36
      %s66 = ssub.s32 %s25, %s32
      %s67 = sor.u32 %s65, %s66
      %p68 = scmp.eq.s32.totalorder %s67, 0
      %s70 = sadd.s32 %s69, 1
      %s71 = scalar_select %p68, %s69, %s70
      %p74 = pneg %p68
      %p75 = scmp.eq.s32.totalorder %s17, 1
      %p76 = por %p74, %p75
      %p77 = scmp.ne.s32.totalorder %s69, %s72
      %p78 = scmp.eq.s32.totalorder %s17, 0
      %p79 = por %p77, %p78
      %p80 = scmp.ne.s32.totalorder %s69, %s72
      %p81 = scmp.eq.s32.totalorder %s22, 1
      %p82 = por %p80, %p81
      %p83 = scmp.ne.s32.totalorder %s72, %s73
      %p84 = scmp.eq.s32.totalorder %s22, 0
      %p85 = por %p83, %p84
      %p86 = scmp.ne.s32.totalorder %s72, %s73
      %p87 = scmp.eq.s32.totalorder %s23, 1
      %p88 = por %p86, %p87
      %p90 = scmp.ne.s32.totalorder %s73, %s89
      %p91 = scmp.eq.s32.totalorder %s23, 0
      %p92 = por %p90, %p91
      %s94 = sadd.s32 %s93, 1
      %p97 = scmp.eq.s32.totalorder %s17, 1
      %p98 = scmp.ne.s32.totalorder %s93, %s95
      %p99 = scmp.eq.s32.totalorder %s17, 0
      %p100 = por %p98, %p99
      %p101 = scmp.ne.s32.totalorder %s93, %s95
      %p102 = scmp.eq.s32.totalorder %s22, 1
      %p103 = por %p101, %p102
      %p104 = scmp.ne.s32.totalorder %s95, %s96
      %p105 = scmp.eq.s32.totalorder %s22, 0
      %p106 = por %p104, %p105
      %p107 = scmp.ne.s32.totalorder %s95, %s96
      %p108 = scmp.eq.s32.totalorder %s23, 1
      %p109 = por %p107, %p108
      %p111 = scmp.ne.s32.totalorder %s96, %s110
      %p112 = scmp.eq.s32.totalorder %s23, 0
      %p113 = por %p111, %p112
      %s115 = sadd.s32 %s114, 1
      %p118 = scmp.eq.s32.totalorder %s17, 1
      %p119 = scmp.ne.s32.totalorder %s114, %s116
      %p120 = scmp.eq.s32.totalorder %s17, 0
      %p121 = por %p119, %p120
      %p122 = scmp.ne.s32.totalorder %s114, %s116
      %p123 = scmp.eq.s32.totalorder %s22, 1
      %p124 = por %p122, %p123
      %p125 = scmp.ne.s32.totalorder %s116, %s117
      %p126 = scmp.eq.s32.totalorder %s22, 0
      %p127 = por %p125, %p126
      %p128 = scmp.ne.s32.totalorder %s116, %s117
      %p129 = scmp.eq.s32.totalorder %s23, 1
      %p130 = por %p128, %p129
      %p132 = scmp.ne.s32.totalorder %s117, %s131
      %p133 = scmp.eq.s32.totalorder %s23, 0
      %p134 = por %p132, %p133
      %s136 = sadd.s32 %s135, 1
      %p139 = scmp.eq.s32.totalorder %s17, 1
      %p140 = scmp.ne.s32.totalorder %s135, %s137
      %p141 = scmp.eq.s32.totalorder %s17, 0
      %p142 = por %p140, %p141
      %p143 = scmp.ne.s32.totalorder %s135, %s137
      %p144 = scmp.eq.s32.totalorder %s22, 1
      %p145 = por %p143, %p144
      %p146 = scmp.ne.s32.totalorder %s137, %s138
      %p147 = scmp.eq.s32.totalorder %s22, 0
      %p148 = por %p146, %p147
      %p149 = scmp.ne.s32.totalorder %s137, %s138
      %p150 = scmp.eq.s32.totalorder %s23, 1
      %p151 = por %p149, %p150
      %p153 = scmp.ne.s32.totalorder %s138, %s152
      %p154 = scmp.eq.s32.totalorder %s23, 0
      %p155 = por %p153, %p154
      %s156 = ssub.s32 %s24, %s36
      %s157 = ssub.s32 %s25, %s32
      %s158 = sor.u32 %s156, %s157
      %p159 = scmp.eq.s32.totalorder %s158, 0
      %s161 = sadd.s32 %s160, 1
      %s162 = scalar_select %p159, %s160, %s161
      %p165 = pneg %p159
      %p166 = scmp.eq.s32.totalorder %s17, 1
      %p167 = por %p165, %p166
      %p168 = scmp.ne.s32.totalorder %s160, %s163
      %p169 = scmp.eq.s32.totalorder %s17, 0
      %p170 = por %p168, %p169
      %p171 = scmp.ne.s32.totalorder %s160, %s163
      %p172 = scmp.eq.s32.totalorder %s22, 1
      %p173 = por %p171, %p172
      %p174 = scmp.ne.s32.totalorder %s163, %s164
      %p175 = scmp.eq.s32.totalorder %s22, 0
      %p176 = por %p174, %p175
      %p177 = scmp.ne.s32.totalorder %s163, %s164
      %p178 = scmp.eq.s32.totalorder %s23, 1
      %p179 = por %p177, %p178
      %p181 = scmp.ne.s32.totalorder %s164, %s180
      %p182 = scmp.eq.s32.totalorder %s23, 0
      %p183 = por %p181, %p182
      %p184 = scmp.le.s32.totalorder 1, %s17
      %p185 = scmp.lt.s32.totalorder %s17, 3
      %p186 = pnand %p184, %p185
      %p187 = pneg %p186
      // Predicated region
      $region9: #{tpu_custom_call.1} parent=5 // pred_check
        _
      $region10: #{tpu_custom_call.1} parent=5 // pred_check_branch
        %189 = sbr.rel (%p186) target = $region12
      $region11: #{tpu_custom_call.1} parent=5 // pred_region
        %s190 = ssub.s32 %s17, 1
        // Predicated region
        $region13: #{tpu_custom_call.1} parent=11 // pred_check
          %p191 = pneg %p106
        $region14: #{tpu_custom_call.1} parent=11 // pred_check_branch
          %193 = sbr.rel (%p191) target = $region16
        $region15: #{tpu_custom_call.1} parent=11 // pred_region
          _
        $region16: #{tpu_custom_call.1} parent=11 // pred_fallthru
          _
        // Predicated region
        $region17: #{tpu_custom_call.1} parent=11 // pred_check
          %p194 = pneg %p127
        $region18: #{tpu_custom_call.1} parent=11 // pred_check_branch
          %196 = sbr.rel (%p194) target = $region20
        $region19: #{tpu_custom_call.1} parent=11 // pred_region
          _
        $region20: #{tpu_custom_call.1} parent=11 // pred_fallthru
          _
        // Predicated region
        $region21: #{tpu_custom_call.1} parent=11 // pred_check
          %p197 = pneg %p148
        $region22: #{tpu_custom_call.1} parent=11 // pred_check_branch
          %199 = sbr.rel (%p197) target = $region24
        $region23: #{tpu_custom_call.1} parent=11 // pred_region
          _
        $region24: #{tpu_custom_call.1} parent=11 // pred_fallthru
          _
      $region12: #{tpu_custom_call.1} parent=5 // pred_fallthru
        _
      %p200 = scmp.lt.s32.totalorder %s17, 2
      // Predicated region
      $region25: #{tpu_custom_call.1} parent=5 // pred_check
        %p201 = pneg %p200
      $region26: #{tpu_custom_call.1} parent=5 // pred_check_branch
        %203 = sbr.rel (%p201) target = $region28
      $region27: #{tpu_custom_call.1} parent=5 // pred_region
        // Predicated region
        $region29: #{tpu_custom_call.1} parent=27 // pred_check
          %p204 = pneg %p51
        $region30: #{tpu_custom_call.1} parent=27 // pred_check_branch
          %206 = sbr.rel (%p204) target = $region32
        $region31: #{tpu_custom_call.1} parent=27 // pred_region
          %s207 = smul.u32 2, %s25
          %p208 = scmp.lt.s32.totalorder %s24, 1
          %s209 = scalar_select %p208, %s24, 1
          %p210 = scmp.lt.s32.totalorder %s207, 1
          %s211 = scalar_select %p210, %s207, 1
          %s212 = smul.addr %s209, 2
          %s213 = sadd.s32 %s211, %s212
          %s214 = smul.addr %s213, 8
          %s215 = scalar_lea.vmem %s0, %s214
          %s216 = smul.u32 2, %s25
        $region32: #{tpu_custom_call.1} parent=27 // pred_fallthru
          _
        // Predicated region
        $region33: #{tpu_custom_call.1} parent=27 // pred_check
          %p217 = pneg %p79
        $region34: #{tpu_custom_call.1} parent=27 // pred_check_branch
          %219 = sbr.rel (%p217) target = $region36
        $region35: #{tpu_custom_call.1} parent=27 // pred_region
          %s220 = sand.u32 %s69, 1
          %s221 = scalar_lea.sflag [#allocation3], %s220
          %s222 = sand.u32 %s69, 1
          %s223 = smul.addr %s222, 16
          %s224 = scalar_lea.vmem [#allocation2], %s223
          %s225 = smul.u32 2, %s25
          %s227 = ssub.s32 256, 256
          %228 = vsyncadd %s221, %s227
          %s229 = smul.addr %s24, 2
          %s230 = sadd.s32 %s225, %s229
          %s231 = smul.addr %s230, 128
          %s232 = scalar_lea.hbm %s1, %s231
          %s234 = sshll.u32 %s224, 4
          %s235 = int_to_ptr.vmem [resolvable:$true] %s234
          %237 = dma.hbm_to_vmem [thread:$0]  %s232, 256, %s235, %s221
        $region36: #{tpu_custom_call.1} parent=27 // pred_fallthru
          _
      $region28: #{tpu_custom_call.1} parent=5 // pred_fallthru
        _
      %p238 = scmp.le.s32.totalorder 1, %s17
      %p239 = scmp.lt.s32.totalorder %s17, 3
      %p240 = pnand %p238, %p239
      %p241 = pneg %p240
      // Predicated region
      $region37: #{tpu_custom_call.1} parent=5 // pred_check
        _
      $region38: #{tpu_custom_call.1} parent=5 // pred_check_branch
        %243 = sbr.rel (%p240) target = $region40
      $region39: #{tpu_custom_call.1} parent=5 // pred_region
        %s244 = ssub.s32 %s17, 1
        %s245 = sand.u32 %s72, 1
        %s246 = scalar_lea.sflag [#allocation3], %s245
        %s247 = sand.u32 %s72, 1
        %s248 = smul.addr %s247, 16
        %s249 = scalar_lea.vmem [#allocation2], %s248
        // Predicated region
        $region41: #{tpu_custom_call.1} parent=39 // pred_check
          %p250 = pneg %p85
        $region42: #{tpu_custom_call.1} parent=39 // pred_check_branch
          %252 = sbr.rel (%p250) target = $region44
        $region43: #{tpu_custom_call.1} parent=39 // pred_region
          %253 = dma.done %s246, 256
        $region44: #{tpu_custom_call.1} parent=39 // pred_fallthru
          _
        %s254 = smul.u32 2, %s27
        %p255 = scmp.lt.s32.totalorder %s26, 1
        %s256 = scalar_select %p255, %s26, 1
        %p257 = scmp.lt.s32.totalorder %s254, 1
        %s258 = scalar_select %p257, %s254, 1
        %s259 = smul.addr %s256, 2
        %s260 = sadd.s32 %s258, %s259
        %s261 = smul.addr %s260, 8
        %s262 = scalar_lea.vmem %s0, %s261
        %p263 = pneg %p57
        %p264 = pneg %p54
        %s265 = sand.u32 %s72, 1
        %s266 = scalar_lea.sflag [#allocation3], %s265
        %s267 = sand.u32 %s72, 1
        %s268 = smul.addr %s267, 16
        %s269 = scalar_lea.vmem [#allocation2], %s268
        %p270 = pneg %p85
        %p271 = pneg %p82
        %p272 = pneg %p106
        %p273 = pneg %p103
        %p274 = pneg %p127
        %p275 = pneg %p124
        %p276 = pneg %p148
        %p277 = pneg %p145
        %p278 = pneg %p176
        %p279 = pneg %p173
        %s280 = sand.u32 %s163, 1
        %s281 = scalar_lea.sflag [#allocation4], %s280
        %s282 = sand.u32 %s163, 1
        %s283 = smul.addr %s282, 16
        %s284 = scalar_lea.vmem [#allocation5], %s283
        %s285 = smul.u32 2, %s27
        %p286 = scmp.lt.s32.totalorder %s26, 1
        %s287 = scalar_select %p286, %s26, 1
        %p288 = scmp.lt.s32.totalorder %s285, 1
        %s289 = scalar_select %p288, %s285, 1
        %s290 = smul.addr %s287, 2
        %s291 = sadd.s32 %s289, %s290
        %s292 = smul.addr %s291, 8
        %s293 = scalar_lea.vmem %s0, %s292
        %s294 = smul.u32 2, %s27
        %s295 = smul.u32 2, %s27
        %s296 = smul.u32 2, %s27
        %v297 = vld [vmem:[%s293] sm:$0xff]
        %v298 = vld [vmem:[%s293 + $0x8] sm:$0xff]
        %v299 = vld [vmem:[%s249] sm:$0xff]
        %v300 = vld [vmem:[%s249 + $0x8] sm:$0xff]
        %v301 = vld [vmem:[%s2] sm:$0xff]
        %v302 = vld [vmem:[%s2 + $0x8] sm:$0xff]
        %v303 = vld [vmem:[%s2 + $0x10] sm:$0xff]
        %v304 = vld [vmem:[%s4] sm:$0xff]
        %v305 = vld [vmem:[%s4 + $0x8] sm:$0xff]
        %v306 = vld [vmem:[%s4 + $0x10] sm:$0xff]
        %308 = vset.pattern.permute.xlu0 0
        %309 = vperm.xlu0 %308, %v304
        %v310 = vpop.permute.xlu0 %309
        %313 = vset.pattern.permute.xlu0 0
        %314 = vperm.xlu0 %313, %v305
        %v315 = vpop.permute.xlu0 %314
        %318 = vset.pattern.permute.xlu0 0
        %319 = vperm.xlu0 %318, %v306
        %v320 = vpop.permute.xlu0 %319
        %vm322 = vcmask 64512
        %v324 = vsel %vm322, %v301, 0
        %v327 = vsel %vm322, %v302, 0
        %v330 = vsel %vm322, %v303, 0
        %332 = vmatprep.subr.mxu0 %v298
        %333 = vmatpush1.msra.mxu0 %v297
        %334 = vmatprep.subr.mxu0 0.0
        %335 = vmatpush1.msra.mxu0 0.0
        %336 = vmatprep.subr.mxu0 0.0
        %337 = vmatpush1.msra.mxu0 0.0
        %338 = vmatprep.subr.mxu0 0.0
        %339 = vmatpush1.msra.mxu0 0.0
        %340 = vmatprep.subr.mxu0 0.0
        %341 = vmatpush1.msra.mxu0 0.0
        %342 = vmatprep.subr.mxu0 0.0
        %343 = vmatpush1.msra.mxu0 0.0
        %344 = vmatprep.subr.mxu0 0.0
        %345 = vmatpush1.msra.mxu0 0.0
        %346 = vmatprep.subr.mxu0 0.0
        %347 = vmatpush1.msra.mxu0 0.0
        %348 = vmatprep.subr.mxu0 0.0
        %349 = vmatpush1.msra.mxu0 0.0
        %350 = vmatprep.subr.mxu0 0.0
        %351 = vmatpush1.msra.mxu0 0.0
        %352 = vmatprep.subr.mxu0 0.0
        %353 = vmatpush1.msra.mxu0 0.0
        %354 = vmatprep.subr.mxu0 0.0
        %355 = vmatpush1.msra.mxu0 0.0
        %356 = vmatprep.subr.mxu0 0.0
        %357 = vmatpush1.msra.mxu0 0.0
        %358 = vmatprep.subr.mxu0 0.0
        %359 = vmatpush1.msra.mxu0 0.0
        %360 = vmatprep.subr.mxu0 0.0
        %361 = vmatpush1.msra.mxu0 0.0
        %362 = vmatprep.subr.mxu0 0.0
        %363 = vmatpush1.msra.mxu0 0.0
        %364 = vmatprep.subr.mxu0 0.0
        %365 = vmatpush1.msra.mxu0 0.0
        %366 = vmatprep.subr.mxu0 0.0
        %367 = vmatpush1.msra.mxu0 0.0
        %368 = vmatprep.subr.mxu0 0.0
        %369 = vmatpush1.msra.mxu0 0.0
        %370 = vmatprep.subr.mxu0 0.0
        %371 = vmatpush1.msra.mxu0 0.0
        %372 = vmatprep.subr.mxu0 0.0
        %373 = vmatpush1.msra.mxu0 0.0
        %374 = vmatprep.subr.mxu0 0.0
        %375 = vmatpush1.msra.mxu0 0.0
        %376 = vmatprep.subr.mxu0 0.0
        %377 = vmatpush1.msra.mxu0 0.0
        %378 = vmatprep.subr.mxu0 0.0
        %379 = vmatpush1.msra.mxu0 0.0
        %380 = vmatprep.subr.mxu0 0.0
        %381 = vmatpush1.msra.mxu0 0.0
        %382 = vmatprep.subr.mxu0 0.0
        %383 = vmatpush1.msra.mxu0 0.0
        %384 = vmatprep.subr.mxu0 0.0
        %385 = vmatpush1.msra.mxu0 0.0
        %386 = vmatprep.subr.mxu0 0.0
        %387 = vmatpush1.msra.mxu0 0.0
        %388 = vmatprep.subr.mxu0 0.0
        %389 = vmatpush1.msra.mxu0 0.0
        %390 = vmatprep.subr.mxu0 0.0
        %391 = vmatpush1.msra.mxu0 0.0
        %392 = vmatprep.subr.mxu0 0.0
        %393 = vmatpush1.msra.mxu0 0.0
        %394 = vmatprep.subr.mxu0 0.0
        %395 = vmatpush1.msra.mxu0 0.0
        %396 = vmatprep.mubr.f32.mxu0 0.0
        %397 = vmatmul.mubr.f32.gmra.mrb[0].mxu0 %v324
        %v398 = vpop.f32.mrb[0].mxu0
        %v399 = vadd.f32 %v310, %v398
        %v400 = vpop.f32.mrb[0].mxu0
        %v401 = vadd.f32 %v310, %v400
        %402 = vmatprep.mubr.f32.mxu0 0.0
        %403 = vmatmul.mubr.f32.gmra.mrb[0].mxu0 %v327
        %v404 = vpop.f32.mrb[0].mxu0
        %v405 = vadd.f32 %v315, %v404
        %v406 = vpop.f32.mrb[0].mxu0
        %v407 = vadd.f32 %v315, %v406
        %408 = vmatprep.mubr.f32.mxu0 0.0
        %409 = vmatmul.mubr.f32.gmra.mrb[0].mxu0 %v330
        %v410 = vpop.f32.mrb[0].mxu0
        %v411 = vadd.f32 %v320, %v410
        %v412 = vpop.f32.mrb[0].mxu0
        %v413 = vadd.f32 %v320, %v412
        %414 = vdwg.mxu0
        %v415 = vld [vmem:[%s3] sm:$0xff]
        %v417 = vsel %vm322, %v415, 0
        %419 = vmatprep.subr.mxu0 %v300
        %420 = vmatpush1.msra.mxu0 %v299
        %421 = vmatprep.subr.mxu0 0.0
        %422 = vmatpush1.msra.mxu0 0.0
        %423 = vmatprep.subr.mxu0 0.0
        %424 = vmatpush1.msra.mxu0 0.0
        %425 = vmatprep.subr.mxu0 0.0
        %426 = vmatpush1.msra.mxu0 0.0
        %427 = vmatprep.subr.mxu0 0.0
        %428 = vmatpush1.msra.mxu0 0.0
        %429 = vmatprep.subr.mxu0 0.0
        %430 = vmatpush1.msra.mxu0 0.0
        %431 = vmatprep.subr.mxu0 0.0
        %432 = vmatpush1.msra.mxu0 0.0
        %433 = vmatprep.subr.mxu0 0.0
        %434 = vmatpush1.msra.mxu0 0.0
        %435 = vmatprep.subr.mxu0 0.0
        %436 = vmatpush1.msra.mxu0 0.0
        %437 = vmatprep.subr.mxu0 0.0
        %438 = vmatpush1.msra.mxu0 0.0
        %439 = vmatprep.subr.mxu0 0.0
        %440 = vmatpush1.msra.mxu0 0.0
        %441 = vmatprep.subr.mxu0 0.0
        %442 = vmatpush1.msra.mxu0 0.0
        %443 = vmatprep.subr.mxu0 0.0
        %444 = vmatpush1.msra.mxu0 0.0
        %445 = vmatprep.subr.mxu0 0.0
        %446 = vmatpush1.msra.mxu0 0.0
        %447 = vmatprep.subr.mxu0 0.0
        %448 = vmatpush1.msra.mxu0 0.0
        %449 = vmatprep.subr.mxu0 0.0
        %450 = vmatpush1.msra.mxu0 0.0
        %451 = vmatprep.subr.mxu0 0.0
        %452 = vmatpush1.msra.mxu0 0.0
        %453 = vmatprep.subr.mxu0 0.0
        %454 = vmatpush1.msra.mxu0 0.0
        %455 = vmatprep.subr.mxu0 0.0
        %456 = vmatpush1.msra.mxu0 0.0
        %457 = vmatprep.subr.mxu0 0.0
        %458 = vmatpush1.msra.mxu0 0.0
        %459 = vmatprep.subr.mxu0 0.0
        %460 = vmatpush1.msra.mxu0 0.0
        %461 = vmatprep.subr.mxu0 0.0
        %462 = vmatpush1.msra.mxu0 0.0
        %463 = vmatprep.subr.mxu0 0.0
        %464 = vmatpush1.msra.mxu0 0.0
        %465 = vmatprep.subr.mxu0 0.0
        %466 = vmatpush1.msra.mxu0 0.0
        %467 = vmatprep.subr.mxu0 0.0
        %468 = vmatpush1.msra.mxu0 0.0
        %469 = vmatprep.subr.mxu0 0.0
        %470 = vmatpush1.msra.mxu0 0.0
        %471 = vmatprep.subr.mxu0 0.0
        %472 = vmatpush1.msra.mxu0 0.0
        %473 = vmatprep.subr.mxu0 0.0
        %474 = vmatpush1.msra.mxu0 0.0
        %475 = vmatprep.subr.mxu0 0.0
        %476 = vmatpush1.msra.mxu0 0.0
        %477 = vmatprep.subr.mxu0 0.0
        %478 = vmatpush1.msra.mxu0 0.0
        %479 = vmatprep.subr.mxu0 0.0
        %480 = vmatpush1.msra.mxu0 0.0
        %481 = vmatprep.subr.mxu0 0.0
        %482 = vmatpush1.msra.mxu0 0.0
        %483 = vmatprep.mubr.f32.mxu0 0.0
        %484 = vmatmul.mubr.f32.gmra.mrb[0].mxu0 %v417
        %v485 = vpop.f32.mrb[0].mxu0
        %v486 = vadd.f32 0.0, %v485
        %v487 = vpop.f32.mrb[0].mxu0
        %v488 = vadd.f32 0.0, %v487
        %489 = vdwg.mxu0
        %v490 = vadd.f32 %v399, %v486
        %v491 = vadd.f32 %v401, %v488
        %v492 = vmul.f32 %v490, 0.5
        %v493 = vmul.f32 %v491, 0.5
        %v494 = vtanh.pop %v492
        %v495 = vtanh.pop %v493
        %v496 = vmul.f32 %v494, 0.5
        %v497 = vmul.f32 %v495, 0.5
        %v498 = vadd.f32 %v496, 0.5
        %v499 = vadd.f32 %v497, 0.5
        %v500 = vmul.f32 %v498, %v299
        %v501 = vmul.f32 %v499, %v300
        %v502 = vmul.f32 %v405, 0.5
        %v503 = vmul.f32 %v407, 0.5
        %v504 = vtanh.pop %v502
        %v505 = vtanh.pop %v503
        %v506 = vmul.f32 %v504, 0.5
        %v507 = vmul.f32 %v505, 0.5
        %v508 = vadd.f32 %v506, 0.5
        %v509 = vadd.f32 %v507, 0.5
        %v510 = vtanh.pop %v411
        %v511 = vtanh.pop %v413
        %v512 = vmul.f32 %v508, %v510
        %v513 = vmul.f32 %v509, %v511
        %v514 = vadd.f32 %v500, %v512
        %v515 = vadd.f32 %v501, %v513
        %vm516 = vcmp.ge.f32.partialorder %v514, 0.0
        %vm517 = vcmp.ge.f32.partialorder %v515, 0.0
        %v518 = vmul.f32 %v514, 0.01
        %v519 = vmul.f32 %v515, 0.01
        %v520 = vsel %vm516, %v514, %v518
        %v521 = vsel %vm517, %v515, %v519
        %522 = vst [vmem:[%s284] sm:$0xff] %v520
        %523 = vst [vmem:[%s284 + $0x8] sm:$0xff] %v521
        %s524 = sand.u32 %s163, 1
        %s525 = scalar_lea.sflag [#allocation4], %s524
        %s526 = sand.u32 %s163, 1
        %s527 = smul.addr %s526, 16
        %s528 = scalar_lea.vmem [#allocation5], %s527
        // Predicated region
        $region45: #{tpu_custom_call.1} parent=39 // pred_check
          %p529 = pneg %p173
        $region46: #{tpu_custom_call.1} parent=39 // pred_check_branch
          %531 = sbr.rel (%p529) target = $region48
        $region47: #{tpu_custom_call.1} parent=39 // pred_region
          %s532 = smul.u32 2, %s27
          %s534 = ssub.s32 256, 256
          %535 = vsyncadd %s525, %s534
          %s536 = smul.addr %s26, 2
          %s537 = sadd.s32 %s532, %s536
          %s538 = smul.addr %s537, 128
          %s539 = scalar_lea.hbm %s5, %s538
          %s541 = sshll.u32 %s528, 4
          %s542 = int_to_ptr.vmem [resolvable:$true] %s541
          %544 = dma.vmem_to_hbm [thread:$0]  %s542, 256, %s539, %s525
        $region48: #{tpu_custom_call.1} parent=39 // pred_fallthru
          _
      $region40: #{tpu_custom_call.1} parent=5 // pred_fallthru
        _
      %p545 = scmp.le.s32.totalorder 2, %s17
      // Predicated region
      $region49: #{tpu_custom_call.1} parent=5 // pred_check
        %p546 = pneg %p545
      $region50: #{tpu_custom_call.1} parent=5 // pred_check_branch
        %548 = sbr.rel (%p546) target = $region52
      $region51: #{tpu_custom_call.1} parent=5 // pred_region
        %s549 = ssub.s32 %s17, 2
        // Predicated region
        $region53: #{tpu_custom_call.1} parent=51 // pred_check
          %p550 = pneg %p179
        $region54: #{tpu_custom_call.1} parent=51 // pred_check_branch
          %552 = sbr.rel (%p550) target = $region56
        $region55: #{tpu_custom_call.1} parent=51 // pred_region
          %s553 = sand.u32 %s164, 1
          %s554 = scalar_lea.sflag [#allocation4], %s553
          %s555 = sand.u32 %s164, 1
          %s556 = smul.addr %s555, 16
          %s557 = scalar_lea.vmem [#allocation5], %s556
          %558 = dma.done %s554, 256
        $region56: #{tpu_custom_call.1} parent=51 // pred_fallthru
          _
      $region52: #{tpu_custom_call.1} parent=5 // pred_fallthru
        _
    $region6: #{tpu_custom_call.1} parent=1 // loop_footer
      %s21 = sadd.s32 1, %s17
    $region7: #{tpu_custom_call.1} parent=1 // loop_footer_branch
      %16 = sbr.rel target = $region3
    $region8: #{tpu_custom_call.1} parent=1 // loop_exit
      _
    %559 = vsyncpa [#allocation3], 1
    %s560 = scalar_lea.sflag [#allocation3], 1
    %561 = vsyncpa %s560, 1
    %562 = vsyncpa [#allocation4], 1
    %s563 = scalar_lea.sflag [#allocation4], 1
    %564 = vsyncpa %s563, 1

</llo_original>
